<compile_context>
chip_gen: v5e
topology: v5e:2x2
jax: 0.10.0
libtpu: 0.0.40
codegen_flags: <defaults>
</compile_context>

<pallas_src>
import jax
import jax.numpy as jnp
from jax import lax
from jax.experimental import pallas as pl
from jax.experimental.pallas import tpu as pltpu


def _layernorm_kernel(x_ref, w_ref, b_ref, o_ref):
    """Regular path: one logical row per tile row (C is the lane dim)."""
    x = x_ref[...].astype(jnp.float32)                       # (T, C)
    c = x.shape[-1]
    ones_c = jnp.ones((c, 1), jnp.float32)
    inv_c = 1.0 / c

    # Two-pass stats; row reductions on the MXU (idle otherwise).
    mu = jnp.dot(x, ones_c, preferred_element_type=jnp.float32) * inv_c   # (T, 1)
    xc = x - mu
    var = jnp.dot(xc * xc, ones_c, preferred_element_type=jnp.float32) * inv_c
    inv = lax.rsqrt(var + 1e-5)

    w = w_ref[...].astype(jnp.float32)                        # (1, C)
    b = b_ref[...].astype(jnp.float32)
    o_ref[...] = (xc * inv * w + b).astype(o_ref.dtype)


def _layernorm_folded_kernel(x_ref, w_ref, b_ref, seg_ref, o_ref):
    """Lane-dense path for small C (128 % C == 0).

    Each 128-lane physical row holds F = 128 // C consecutive logical rows.
    `seg` is the block-diagonal (128, F) ones matrix: seg[l, f] = (l // C == f).
    Segmented reductions (x @ seg) and broadcast-back (a @ seg^T via dot_general)
    run on the MXU; loads/stores stay fully lane-dense.
    """
    x = x_ref[...].astype(jnp.float32)                        # (T, 128)
    seg = seg_ref[...]                                        # (128, F) f32
    f = seg.shape[-1]
    inv_c = f / float(x.shape[-1])                            # == 1 / C

    def bcast(a):                                             # (T, F) -> (T, 128)
        return lax.dot_general(a, seg,
                               dimension_numbers=(((1,), (1,)), ((), ())),
                               preferred_element_type=jnp.float32)

    mu = jnp.dot(x, seg, preferred_element_type=jnp.float32) * inv_c      # (T, F)
    xc = x - bcast(mu)
    var = jnp.dot(xc * xc, seg, preferred_element_type=jnp.float32) * inv_c
    inv_b = bcast(lax.rsqrt(var + 1e-5))

    w = w_ref[...].astype(jnp.float32)                        # (1, 128): weight tiled F x
    b = b_ref[...].astype(jnp.float32)
    o_ref[...] = (xc * inv_b * w + b).astype(o_ref.dtype)


def _pick_tile_rows(R, C, itemsize, sublane, *,
                    budget_bytes=12 * 1024 * 1024,
                    block_bytes_cap=4 * 1024 * 1024,
                    min_grid_steps=8,
                    min_split_bytes=4 * 1024 * 1024):
    """Row-tile size (multiple of `sublane`) balancing:
      * a live-VMEM budget (2 in + 2 out pipeline buffers + ~3 f32 temps/row),
      * a byte-based per-HBM-block cap (~4 MiB, independent of C),
      * a minimum grid depth so the double-buffer pipeline and v7x dual-TC
        sharding have work to overlap (only when the input is big enough).
    """
    def round_up(v):
        return max(sublane, ((v + sublane - 1) // sublane) * sublane)

    def round_down(v):
        return max(sublane, (v // sublane) * sublane)

    per_row_live = C * (4 * itemsize + 3 * 4)
    t = budget_bytes // max(per_row_live, 1)

    # Byte-based block cap (replaces the old fixed 4096-row cap).
    t = min(t, max(block_bytes_cap // max(C * itemsize, 1), 1))

    r_up = round_up(R)
    t = min(t, r_up)

    # Keep >= min_grid_steps blocks for non-tiny inputs (pipelining + v7x balance).
    if R * C * itemsize >= min_split_bytes:
        t = min(t, round_up(-(-r_up // min_grid_steps)))

    return int(round_down(t))


def with_bias_layernorm(x, weight, bias, *, tile_rows=None,
                        vmem_limit_bytes=40 * 1024 * 1024):
    """LayerNorm over the last dim with affine weight/bias (WithBias_LayerNorm)."""
    orig_shape = x.shape
    C = orig_shape[-1]
    weight = weight.reshape(C)
    bias = bias.reshape(C)

    x2 = x.reshape(-1, C)
    R = x2.shape[0]

    itemsize = jnp.dtype(x.dtype).itemsize
    # Minimum sublane multiple: 8 for 4-byte dtypes, 16 for bf16, 32 for int8.
    sublane = max(8, 32 // max(itemsize, 1))

    # Lane-dense fold for small C: pack F = 128 // C logical rows per 128-lane
    # physical row so loads/stores use every lane.
    fold = (C < 128) and (128 % C == 0) and ((R * C) % 128 == 0)

    if fold:
        F = 128 // C
        Rp, Cp = R // F, 128
        x2 = x2.reshape(Rp, Cp)
        w2 = jnp.tile(weight, F).reshape(1, Cp)
        b2 = jnp.tile(bias, F).reshape(1, Cp)
        seg = (jnp.arange(Cp)[:, None] // C ==
               jnp.arange(F)[None, :]).astype(jnp.float32)        # (128, F)
    else:
        # TODO(synk): C not a multiple of 128 and not foldable (e.g. C=200)
        # still uses masked lane stores; a one-time pad of C would fix that.
        F = 1
        Rp, Cp = R, C
        w2 = weight.reshape(1, C)
        b2 = bias.reshape(1, C)
        seg = None

    if tile_rows is None:
        tile_rows = _pick_tile_rows(Rp, Cp, itemsize, sublane)
    assert tile_rows % sublane == 0, (
        f"tile_rows ({tile_rows}) must be a multiple of {sublane} for "
        f"dtype {x.dtype}")

    grid = (pl.cdiv(Rp, tile_rows),)   # ragged last block masked by Pallas.

    row_spec = pl.BlockSpec((tile_rows, Cp), lambda i: (i, 0))
    vec_spec = pl.BlockSpec((1, Cp), lambda i: (0, 0))

    if fold:
        kernel = _layernorm_folded_kernel
        in_specs = [row_spec, vec_spec, vec_spec,
                    pl.BlockSpec((Cp, F), lambda i: (0, 0))]
        args = (x2, w2, b2, seg)
    else:
        kernel = _layernorm_kernel
        in_specs = [row_spec, vec_spec, vec_spec]
        args = (x2, w2, b2)

    out = pl.pallas_call(
        kernel,
        out_shape=jax.ShapeDtypeStruct((Rp, Cp), x.dtype),
        grid_spec=pltpu.PrefetchScalarGridSpec(
            num_scalar_prefetch=0,
            grid=grid,
            in_specs=in_specs,
            out_specs=row_spec,
        ),
        compiler_params=pltpu.CompilerParams(
            dimension_semantics=("parallel",),
            vmem_limit_bytes=vmem_limit_bytes,
        ),
    )(*args)

    return out.reshape(orig_shape)


def _reference(x, weight, bias):
    mu = jnp.mean(x, axis=-1, keepdims=True)
    var = jnp.mean((x - mu) ** 2, axis=-1, keepdims=True)
    return (x - mu) / jnp.sqrt(var + 1e-5) * weight + bias


if __name__ == "__main__":
    key = jax.random.PRNGKey(0)
    kx, kw, kb, kx2 = jax.random.split(key, 4)

    # --- Demo shape from the module: (batch, tokens, hidden), normalize hidden.
    B, N, C = 2, 16, 32
    x = jax.random.normal(kx, (B, N, C), dtype=jnp.float32)
    weight = jnp.ones((C,), dtype=jnp.float32) + 0.1 * jax.random.normal(kw, (C,))
    bias = jnp.zeros((C,), dtype=jnp.float32) + 0.1 * jax.random.normal(kb, (C,))

    out = with_bias_layernorm(x, weight, bias)           # lane-dense folded path
    out = jax.block_until_ready(out)
    ref = _reference(x, weight, bias)
    assert out.shape == x.shape
    assert jnp.allclose(out, ref, atol=1e-5, rtol=1e-5)

    # --- Also exercise the regular (C % 128 == 0) path at a small shape.
    C2 = 128
    x_b = jax.random.normal(kx2, (2, 8, C2), dtype=jnp.float32)
    w_b = jnp.ones((C2,), dtype=jnp.float32)
    b_b = jnp.zeros((C2,), dtype=jnp.float32)
    out_b = jax.block_until_ready(with_bias_layernorm(x_b, w_b, b_b))
    assert jnp.allclose(out_b, _reference(x_b, w_b, b_b), atol=1e-5, rtol=1e-5)

    print("KERNEL_OK")
</pallas_src>

<mosaic_0001>
module attributes {stable_mosaic.version = 11 : i64} {
  func.func @_layernorm_folded_kernel(%arg0: i32, %arg1: memref<8x128xf32, #tpu.memory_space<vmem>>, %arg2: memref<1x128xf32, #tpu.memory_space<vmem>>, %arg3: memref<1x128xf32, #tpu.memory_space<vmem>>, %arg4: memref<128x4xf32, #tpu.memory_space<vmem>>, %arg5: memref<8x128xf32, #tpu.memory_space<vmem>>) attributes {dimension_semantics = [#tpu.dimension_semantics<parallel>], iteration_bounds = array<i64: 1>, scalar_prefetch = 0 : i64, scratch_operands = 0 : i64, tpu.core_type = #tpu.core_type<tc>, window_params = [{transform_indices = @transform_0, window_bounds = array<i64: 8, 128>}, {pipeline_mode = #tpu.pipeline_mode<synchronous>, transform_indices = @transform_1, window_bounds = array<i64: 1, 128>}, {pipeline_mode = #tpu.pipeline_mode<synchronous>, transform_indices = @transform_2, window_bounds = array<i64: 1, 128>}, {pipeline_mode = #tpu.pipeline_mode<synchronous>, transform_indices = @transform_3, window_bounds = array<i64: 128, 4>}, {transform_indices = @transform_4, window_bounds = array<i64: 8, 128>}]} {
    %c0 = arith.constant 0 : index
    %c0_0 = arith.constant 0 : index
    %0 = vector.load %arg1[%c0, %c0_0] : memref<8x128xf32, #tpu.memory_space<vmem>>, vector<8x128xf32>
    %c0_1 = arith.constant 0 : index
    %c0_2 = arith.constant 0 : index
    %1 = vector.load %arg4[%c0_1, %c0_2] : memref<128x4xf32, #tpu.memory_space<vmem>>, vector<128x4xf32>
    %cst = arith.constant dense<0.000000e+00> : vector<8x4xf32>
    %2 = tpu.matmul %0, %1, %cst {dimension_numbers = #tpu.dot_dimension_numbers<[1], [0], [0], [1], [0, 0, 1, 1], [], []>} : vector<8x128xf32>, vector<128x4xf32>, vector<8x4xf32> -> vector<8x4xf32>
    %cst_3 = arith.constant 3.125000e-02 : f32
    %3 = vector.broadcast %cst_3 : f32 to vector<8x4xf32>
    %4 = arith.mulf %2, %3 : vector<8x4xf32>
    %cst_4 = arith.constant dense<0.000000e+00> : vector<8x128xf32>
    %5 = tpu.matmul %4, %1, %cst_4 {dimension_numbers = #tpu.dot_dimension_numbers<[1], [1], [0], [0], [0, 0, 1, 0], [], []>} : vector<8x4xf32>, vector<128x4xf32>, vector<8x128xf32> -> vector<8x128xf32>
    %6 = arith.subf %0, %5 : vector<8x128xf32>
    %7 = arith.mulf %6, %6 : vector<8x128xf32>
    %cst_5 = arith.constant dense<0.000000e+00> : vector<8x4xf32>
    %8 = tpu.matmul %7, %1, %cst_5 {dimension_numbers = #tpu.dot_dimension_numbers<[1], [0], [0], [1], [0, 0, 1, 1], [], []>} : vector<8x128xf32>, vector<128x4xf32>, vector<8x4xf32> -> vector<8x4xf32>
    %cst_6 = arith.constant 3.125000e-02 : f32
    %9 = vector.broadcast %cst_6 : f32 to vector<8x4xf32>
    %10 = arith.mulf %8, %9 : vector<8x4xf32>
    %cst_7 = arith.constant 9.99999974E-6 : f32
    %11 = vector.broadcast %cst_7 : f32 to vector<8x4xf32>
    %12 = arith.addf %10, %11 : vector<8x4xf32>
    %13 = math.rsqrt %12 : vector<8x4xf32>
    %cst_8 = arith.constant dense<0.000000e+00> : vector<8x128xf32>
    %14 = tpu.matmul %13, %1, %cst_8 {dimension_numbers = #tpu.dot_dimension_numbers<[1], [1], [0], [0], [0, 0, 1, 0], [], []>} : vector<8x4xf32>, vector<128x4xf32>, vector<8x128xf32> -> vector<8x128xf32>
    %c0_9 = arith.constant 0 : index
    %c0_10 = arith.constant 0 : index
    %15 = vector.load %arg2[%c0_9, %c0_10] : memref<1x128xf32, #tpu.memory_space<vmem>>, vector<1x128xf32>
    %c0_11 = arith.constant 0 : index
    %c0_12 = arith.constant 0 : index
    %16 = vector.load %arg3[%c0_11, %c0_12] : memref<1x128xf32, #tpu.memory_space<vmem>>, vector<1x128xf32>
    %17 = arith.mulf %6, %14 : vector<8x128xf32>
    %18 = vector.broadcast %15 : vector<1x128xf32> to vector<8x128xf32>
    %19 = arith.mulf %17, %18 : vector<8x128xf32>
    %20 = vector.broadcast %16 : vector<1x128xf32> to vector<8x128xf32>
    %21 = arith.addf %19, %20 : vector<8x128xf32>
    %c0_13 = arith.constant 0 : index
    %c0_14 = arith.constant 0 : index
    %22 = vector.load %arg5[%c0_13, %c0_14] : memref<8x128xf32, #tpu.memory_space<vmem>>, vector<8x128xf32>
    tpu.vector_store %arg5[%c0_13, %c0_14], %21 {strides = array<i32>} : memref<8x128xf32, #tpu.memory_space<vmem>>, vector<8x128xf32>,
    return
  }
  func.func @transform_0(%arg0: i32) -> (i32, i32) {
    %c0_i32 = arith.constant 0 : i32
    %c0_i32_0 = arith.constant 0 : i32
    return %arg0, %c0_i32 : i32, i32
  }
  func.func @transform_1(%arg0: i32) -> (i32, i32) {
    %c0_i32 = arith.constant 0 : i32
    %c0_i32_0 = arith.constant 0 : i32
    %c0_i32_1 = arith.constant 0 : i32
    return %c0_i32, %c0_i32_0 : i32, i32
  }
  func.func @transform_2(%arg0: i32) -> (i32, i32) {
    %c0_i32 = arith.constant 0 : i32
    %c0_i32_0 = arith.constant 0 : i32
    %c0_i32_1 = arith.constant 0 : i32
    return %c0_i32, %c0_i32_0 : i32, i32
  }
  func.func @transform_3(%arg0: i32) -> (i32, i32) {
    %c0_i32 = arith.constant 0 : i32
    %c0_i32_0 = arith.constant 0 : i32
    %c0_i32_1 = arith.constant 0 : i32
    return %c0_i32, %c0_i32_0 : i32, i32
  }
  func.func @transform_4(%arg0: i32) -> (i32, i32) {
    %c0_i32 = arith.constant 0 : i32
    %c0_i32_0 = arith.constant 0 : i32
    return %arg0, %c0_i32 : i32, i32
  }
}

</mosaic_0001>

<llo_original>
// kernel: tpu_custom_call.1
$region0: #{tpu_custom_call.1}
  #allocation0 [shape = 'u32[]', space=smem, size = 0x4, offset = 0x4, fixed_abs, tag = 'smem constant byte address 0x4 - core index']
  #allocation1 [shape = 'u32[72,128]{1,0:T(1,128)}', space=vmem, size = 0x9000, scoped, tag = 'internal scratch']
  %s0 = inlined_call_operand.vmem [shape: f32[8,128], index: 0, kind: input, shape index: {}]
  %s1 = inlined_call_operand.vmem [shape: f32[1,128], index: 1, kind: input, shape index: {}]
  %s2 = inlined_call_operand.vmem [shape: f32[1,128], index: 2, kind: input, shape index: {}]
  %s3 = inlined_call_operand.vmem [shape: f32[128,4], index: 3, kind: input, shape index: {}]
  %s4 = inlined_call_operand.hbm [shape: f32[8,128], index: 4, kind: output, shape index: {}]
  %s5 = sld [smem:[#allocation0]]
  $region26: #{tpu_custom_call.1} parent=0
    _
  %s7 = ssub.s32 1, %s5
  %s8 = scalar_select 0, %s7, %s5
  $region1: #{tpu_custom_call.1} parent=0
    #allocation2 [shape = 'u8[4096]{0}', space=vmem, size = 0x1000, scoped, tag = 'output window, operand 0, single buffered']
    #allocation3 [shape = 's32[1]{0}', space=sflag, size = 0x4, scoped, tag = 'scoped memory for tpu_custom_call.1']
    %9 = vsyncpa [#allocation3], 0
    // Predicated region
    $region2: #{tpu_custom_call.1} parent=1 // pred_check
      _
    $region3: #{tpu_custom_call.1} parent=1 // pred_check_branch
      %11 = sbr.rel (0) target = $region5
    $region4: #{tpu_custom_call.1} parent=1 // pred_region
      _
    $region5: #{tpu_custom_call.1} parent=1 // pred_fallthru
      _
    // Predicated region
    $region6: #{tpu_custom_call.1} parent=1 // pred_check
      _
    $region7: #{tpu_custom_call.1} parent=1 // pred_check_branch
      %13 = sbr.rel (0) target = $region9
    $region8: #{tpu_custom_call.1} parent=1 // pred_region
      _
    $region9: #{tpu_custom_call.1} parent=1 // pred_fallthru
      _
    // Predicated region
    $region10: #{tpu_custom_call.1} parent=1 // pred_check
      _
    $region11: #{tpu_custom_call.1} parent=1 // pred_check_branch
      %15 = sbr.rel (0) target = $region13
    $region12: #{tpu_custom_call.1} parent=1 // pred_region
      _
    $region13: #{tpu_custom_call.1} parent=1 // pred_fallthru
      _
    // Predicated region
    $region14: #{tpu_custom_call.1} parent=1 // pred_check
      _
    $region15: #{tpu_custom_call.1} parent=1 // pred_check_branch
      %17 = sbr.rel (0) target = $region17
    $region16: #{tpu_custom_call.1} parent=1 // pred_region
      _
    $region17: #{tpu_custom_call.1} parent=1 // pred_fallthru
      _
    %v18 = vld [vmem:[%s0] sm:$0xff]
    %v19 = vld [vmem:[%s3] sm:$0xff]
    %v20 = vld [vmem:[%s3 + $0x8] sm:$0xff]
    %v21 = vld [vmem:[%s3 + $0x10] sm:$0xff]
    %v22 = vld [vmem:[%s3 + $0x18] sm:$0xff]
    %v23 = vld [vmem:[%s3 + $0x20] sm:$0xff]
    %v24 = vld [vmem:[%s3 + $0x28] sm:$0xff]
    %v25 = vld [vmem:[%s3 + $0x30] sm:$0xff]
    %v26 = vld [vmem:[%s3 + $0x38] sm:$0xff]
    %v27 = vld [vmem:[%s3 + $0x40] sm:$0xff]
    %v28 = vld [vmem:[%s3 + $0x48] sm:$0xff]
    %v29 = vld [vmem:[%s3 + $0x50] sm:$0xff]
    %v30 = vld [vmem:[%s3 + $0x58] sm:$0xff]
    %v31 = vld [vmem:[%s3 + $0x60] sm:$0xff]
    %v32 = vld [vmem:[%s3 + $0x68] sm:$0xff]
    %v33 = vld [vmem:[%s3 + $0x70] sm:$0xff]
    %v34 = vld [vmem:[%s3 + $0x78] sm:$0xff]
    %35 = vmatpush.msra.mxu0 %v34
    %36 = vmatpush.msra.mxu0 %v33
    %37 = vmatpush.msra.mxu0 %v32
    %38 = vmatpush.msra.mxu0 %v31
    %39 = vmatpush.msra.mxu0 %v30
    %40 = vmatpush.msra.mxu0 %v29
    %41 = vmatpush.msra.mxu0 %v28
    %42 = vmatpush.msra.mxu0 %v27
    %43 = vmatpush.msra.mxu0 %v26
    %44 = vmatpush.msra.mxu0 %v25
    %45 = vmatpush.msra.mxu0 %v24
    %46 = vmatpush.msra.mxu0 %v23
    %47 = vmatpush.msra.mxu0 %v22
    %48 = vmatpush.msra.mxu0 %v21
    %49 = vmatpush.msra.mxu0 %v20
    %50 = vmatpush.msra.mxu0 %v19
    %51 = vmatmul.f32.gmra.mxu0 %v18
    %v52 = vpop.f32.mrf.mxu0
    %v53 = vadd.f32 0.0, %v52
    %54 = vdwg.mxu0
    %v55 = vmul.f32 %v53, 0.03125
    %vm56 = vcmask 31744
    %v58 = vsel %vm56, %v55, 0
    %v61 = vsel %vm56, %v19, 0
    %v64 = vsel %vm56, %v20, 0
    %v67 = vsel %vm56, %v21, 0
    %v70 = vsel %vm56, %v22, 0
    %v73 = vsel %vm56, %v23, 0
    %v76 = vsel %vm56, %v24, 0
    %v79 = vsel %vm56, %v25, 0
    %v82 = vsel %vm56, %v26, 0
    %v85 = vsel %vm56, %v27, 0
    %v88 = vsel %vm56, %v28, 0
    %v91 = vsel %vm56, %v29, 0
    %v94 = vsel %vm56, %v30, 0
    %v97 = vsel %vm56, %v31, 0
    %v100 = vsel %vm56, %v32, 0
    %v103 = vsel %vm56, %v33, 0
    %v106 = vsel %vm56, %v34, 0
    %108 = vmatpush.xpose.msra.mxu0 %v106
    %109 = vmatpush.xpose.msra.mxu0 %v103
    %110 = vmatpush.xpose.msra.mxu0 %v100
    %111 = vmatpush.xpose.msra.mxu0 %v97
    %112 = vmatpush.xpose.msra.mxu0 %v94
    %113 = vmatpush.xpose.msra.mxu0 %v91
    %114 = vmatpush.xpose.msra.mxu0 %v88
    %115 = vmatpush.xpose.msra.mxu0 %v85
    %116 = vmatpush.xpose.msra.mxu0 %v82
    %117 = vmatpush.xpose.msra.mxu0 %v79
    %118 = vmatpush.xpose.msra.mxu0 %v76
    %119 = vmatpush.xpose.msra.mxu0 %v73
    %120 = vmatpush.xpose.msra.mxu0 %v70
    %121 = vmatpush.xpose.msra.mxu0 %v67
    %122 = vmatpush.xpose.msra.mxu0 %v64
    %123 = vmatpush.xpose.msra.mxu0 %v61
    %124 = vmatmul.f32.gmra.mxu0 %v58
    %v125 = vpop.f32.mrf.mxu0
    %v126 = vadd.f32 0.0, %v125
    %127 = vdwg.mxu0
    %v128 = vsub.f32 %v18, %v126
    %v129 = vmul.f32 %v128, %v128
    %130 = vmatpush.msra.mxu0 %v34
    %131 = vmatpush.msra.mxu0 %v33
    %132 = vmatpush.msra.mxu0 %v32
    %133 = vmatpush.msra.mxu0 %v31
    %134 = vmatpush.msra.mxu0 %v30
    %135 = vmatpush.msra.mxu0 %v29
    %136 = vmatpush.msra.mxu0 %v28
    %137 = vmatpush.msra.mxu0 %v27
    %138 = vmatpush.msra.mxu0 %v26
    %139 = vmatpush.msra.mxu0 %v25
    %140 = vmatpush.msra.mxu0 %v24
    %141 = vmatpush.msra.mxu0 %v23
    %142 = vmatpush.msra.mxu0 %v22
    %143 = vmatpush.msra.mxu0 %v21
    %144 = vmatpush.msra.mxu0 %v20
    %145 = vmatpush.msra.mxu0 %v19
    %146 = vmatmul.f32.gmra.mxu0 %v129
    %v147 = vpop.f32.mrf.mxu0
    %v148 = vadd.f32 0.0, %v147
    %149 = vdwg.mxu0
    %v150 = vmul.f32 %v148, 0.03125
    %v151 = vadd.f32 %v150, 1e-05
    %v152 = vrsqrt.pop %v151
    %v153 = vmul.f32 %v152, %v151
    %v154 = vmul.f32 %v153, %v152
    %v155 = vmul.f32 0.5, %v154
    %v156 = vsub.f32 1.5, %v155
    %v157 = vmul.f32 %v152, %v156
    %vm158 = vweird.f32 %v151
    %vm159 = vweird.f32 %v152
    %vm160 = vmor %vm158, %vm159
    %v161 = vsel %vm160, %v152, %v157
    %v163 = vsel %vm56, %v161, 0
    %165 = vmatpush.xpose.msra.mxu0 %v106
    %166 = vmatpush.xpose.msra.mxu0 %v103
    %167 = vmatpush.xpose.msra.mxu0 %v100
    %168 = vmatpush.xpose.msra.mxu0 %v97
    %169 = vmatpush.xpose.msra.mxu0 %v94
    %170 = vmatpush.xpose.msra.mxu0 %v91
    %171 = vmatpush.xpose.msra.mxu0 %v88
    %172 = vmatpush.xpose.msra.mxu0 %v85
    %173 = vmatpush.xpose.msra.mxu0 %v82
    %174 = vmatpush.xpose.msra.mxu0 %v79
    %175 = vmatpush.xpose.msra.mxu0 %v76
    %176 = vmatpush.xpose.msra.mxu0 %v73
    %177 = vmatpush.xpose.msra.mxu0 %v70
    %178 = vmatpush.xpose.msra.mxu0 %v67
    %179 = vmatpush.xpose.msra.mxu0 %v64
    %180 = vmatpush.xpose.msra.mxu0 %v61
    %181 = vmatmul.f32.gmra.mxu0 %v163
    %v182 = vpop.f32.mrf.mxu0
    %v183 = vadd.f32 0.0, %v182
    %184 = vdwg.mxu0
    %v185 = vld [vmem:[%s1] sm:$0x1]
    %v186 = vld [vmem:[%s2] sm:$0x1]
    %v187 = vmul.f32 %v128, %v183
    %v189 = vperm.slane %v185, 0
    %v191 = vmul.f32 %v187, %v189
    %v193 = vperm.slane %v186, 0
    %v195 = vadd.f32 %v191, %v193
    %196 = vst [vmem:[#allocation2] sm:$0xff] %v195
    // Predicated region
    $region18: #{tpu_custom_call.1} parent=1 // pred_check
      _
    $region19: #{tpu_custom_call.1} parent=1 // pred_check_branch
      %198 = sbr.rel (0) target = $region21
    $region20: #{tpu_custom_call.1} parent=1 // pred_region
      %200 = vsyncadd [#allocation3], 0
      %s202 = sshll.u32 [#allocation2], 4
      %s203 = int_to_ptr.vmem [resolvable:$true] %s202
      %s204 = sshll.u32 %s4, 4
      %s205 = int_to_ptr.hbm [resolvable:$true] %s204
      %207 = dma.vmem_to_hbm [thread:$0]  %s203, 128, %s205, [#allocation3]
    $region21: #{tpu_custom_call.1} parent=1 // pred_fallthru
      _
    // Predicated region
    $region22: #{tpu_custom_call.1} parent=1 // pred_check
      _
    $region23: #{tpu_custom_call.1} parent=1 // pred_check_branch
      %209 = sbr.rel (0) target = $region25
    $region24: #{tpu_custom_call.1} parent=1 // pred_region
      %211 = dma.done [#allocation3], 128
    $region25: #{tpu_custom_call.1} parent=1 // pred_fallthru
      _
    %212 = vsyncpa [#allocation3], 1

</llo_original>
